<compile_context>
chip_gen: v7x
topology: tpu7x:2x2x1
jax: 0.10.0
libtpu: 0.0.40
codegen_flags: <defaults>
</compile_context>

<pallas_src>
import functools

import jax
import jax.numpy as jnp
from jax import lax
from jax.experimental import pallas as pl
from jax.experimental.pallas import tpu as pltpu


def _project_and_relu(prod, w, bias):
    # prod: (TB, F) f32, w: (1, F) f32, bias: scalar.
    # Contract over F with the TB axis landing on the lane-dense output
    # columns: (1, F) x (TB, F)^T -> (1, TB).  Uses the otherwise-idle MXU and
    # yields unmasked lane-dense stores (biggest relative win on v5e).
    logits = lax.dot_general(w, prod, (((1,), (1,)), ((), ())),
                             preferred_element_type=jnp.float32)
    return jnp.maximum(logits + bias, 0.0)                       # (1, TB)


# ---------------------------------------------------------------------------
# Fast path: embedding tables resident in VMEM, gather = one-hot MXU matmul.
# ---------------------------------------------------------------------------
def mf_resident_kernel(uid_ref, iid_ref,     # VMEM blocks: (TB, 1) int32 per tile
                       user_ref, item_ref,   # VMEM resident: (n_users,F),(n_items,F)
                       w_ref,                # VMEM: (1, F)
                       b_ref,                # SMEM: (1, 1)
                       out_ref):             # VMEM out block: (1, 1, TB)
    n_users = user_ref.shape[0]
    n_items = item_ref.shape[0]
    TB = out_ref.shape[-1]

    uid = uid_ref[...]                                           # (TB, 1) int32
    iid = iid_ref[...]                                           # (TB, 1) int32

    # One-hot gather on the MXU (rows of the tables selected by the indices).
    u_oh = (lax.broadcasted_iota(jnp.int32, (TB, n_users), 1) == uid
            ).astype(jnp.float32)                                # (TB, n_users)
    i_oh = (lax.broadcasted_iota(jnp.int32, (TB, n_items), 1) == iid
            ).astype(jnp.float32)                                # (TB, n_items)

    u_g = jnp.dot(u_oh, user_ref[...], preferred_element_type=jnp.float32)
    i_g = jnp.dot(i_oh, item_ref[...], preferred_element_type=jnp.float32)

    prod = u_g * i_g                                             # (TB, F)
    out = _project_and_relu(prod, w_ref[...], b_ref[0, 0])       # (1, TB)
    out_ref[...] = out.reshape(out_ref.shape)


# ---------------------------------------------------------------------------
# Fallback path: tables in HBM, per-row gather DMAs with a single bulk wait.
# ---------------------------------------------------------------------------
def mf_hbm_gather_kernel(uid_ref, iid_ref,    # scalar prefetch (SMEM): (B_pad,) int32
                         user_hbm, item_hbm,  # HBM (pl.ANY): (n_users,F),(n_items,F)
                         w_ref,               # VMEM: (1, F)
                         b_ref,               # SMEM: (1, 1)
                         out_ref,             # VMEM out block: (1, 1, TB)
                         u_buf, i_buf,        # VMEM scratch: (TB, F) each
                         sems):               # DMA semaphores: (2,)
    TB, F = u_buf.shape
    base = pl.program_id(0) * TB

    def issue(i, carry):
        pltpu.make_async_copy(user_hbm.at[pl.ds(uid_ref[base + i], 1), :],
                              u_buf.at[pl.ds(i, 1), :], sems.at[0]).start()
        pltpu.make_async_copy(item_hbm.at[pl.ds(iid_ref[base + i], 1), :],
                              i_buf.at[pl.ds(i, 1), :], sems.at[1]).start()
        return carry

    # Fire all 2*TB row gathers up front (total in-flight data is only
    # 2*TB*F*4 bytes), then drain each semaphore with ONE bulk wait: DMA
    # semaphores count bytes, so a descriptor covering the full (TB, F)
    # scratch buffer accounts for all TB row DMAs on that semaphore.
    lax.fori_loop(0, TB, issue, 0)
    pltpu.make_async_copy(u_buf, u_buf, sems.at[0]).wait()
    pltpu.make_async_copy(i_buf, i_buf, sems.at[1]).wait()

    prod = u_buf[...] * i_buf[...]                               # (TB, F)
    out = _project_and_relu(prod, w_ref[...], b_ref[0, 0])       # (1, TB)
    out_ref[...] = out.reshape(out_ref.shape)


def _tile_batch(B, max_tile_b):
    if B >= max_tile_b:
        TB = max_tile_b
    else:
        TB = ((B + 7) // 8) * 8
    B_pad = ((B + TB - 1) // TB) * TB
    return TB, B_pad, B_pad // TB


@functools.partial(jax.jit, static_argnames=("max_tile_b", "force_hbm_gather"))
def mf_mse_forward(user_ids, item_ids, user_factors, item_factors, w, b,
                   *, max_tile_b=512, force_hbm_gather=False):
    B = user_ids.shape[0]
    n_users, F = user_factors.shape
    n_items, F2 = item_factors.shape
    assert F == F2

    user_factors = user_factors.astype(jnp.float32)
    item_factors = item_factors.astype(jnp.float32)
    w2d = jnp.asarray(w, jnp.float32).reshape(1, F)
    b2d = jnp.asarray(b, jnp.float32).reshape(1, 1)

    TB, B_pad, num_tiles = _tile_batch(B, max_tile_b)

    # Clamp ids (avoid silent OOB reads for bad ids; PyTorch would raise) and
    # pad the batch to a whole number of tiles (padded rows are dropped).
    uid = jnp.clip(user_ids.astype(jnp.int32), 0, n_users - 1)
    iid = jnp.clip(item_ids.astype(jnp.int32), 0, n_items - 1)
    uid = jnp.pad(uid, (0, B_pad - B))
    iid = jnp.pad(iid, (0, B_pad - B))

    # VMEM budget: decide whether the tables can be resident on-chip (sized
    # conservatively so it also fits v7x's 64 MiB VMEM with headroom).
    table_bytes = (n_users + n_items) * F * 4
    onehot_bytes = (n_users + n_items) * TB * 4
    work_bytes = 4 * TB * F * 4 + 8 * TB * 4 + 2 * F * 4
    resident_est = table_bytes + onehot_bytes + work_bytes
    resident_ok = (max(n_users, n_items) <= 4096
                   and resident_est <= 24 * 1024 * 1024)

    if resident_ok and not force_hbm_gather:
        vmem_limit = int(min(max(2 * resident_est, 32 * 1024 * 1024),
                             56 * 1024 * 1024))
        out = pl.pallas_call(
            mf_resident_kernel,
            out_shape=jax.ShapeDtypeStruct((num_tiles, 1, TB), jnp.float32),
            grid=(num_tiles,),
            in_specs=[
                pl.BlockSpec((TB, 1), lambda t: (t, 0)),             # uid column
                pl.BlockSpec((TB, 1), lambda t: (t, 0)),             # iid column
                pl.BlockSpec((n_users, F), lambda t: (0, 0)),        # user table (resident)
                pl.BlockSpec((n_items, F), lambda t: (0, 0)),        # item table (resident)
                pl.BlockSpec((1, F), lambda t: (0, 0)),              # W
                pl.BlockSpec(memory_space=pltpu.MemorySpace.SMEM),   # b (scalar)
            ],
            out_specs=pl.BlockSpec((1, 1, TB), lambda t: (t, 0, 0)),
            compiler_params=pltpu.CompilerParams(
                dimension_semantics=("parallel",),
                vmem_limit_bytes=vmem_limit,
            ),
        )(uid.reshape(B_pad, 1), iid.reshape(B_pad, 1),
          user_factors, item_factors, w2d, b2d)
    else:
        # TODO(synk): for very large batches, deliver per-tile index slices as
        # tiled SMEM blocks instead of scalar-prefetching the whole (B_pad,)
        # vectors (removes the SMEM ceiling on B).
        hbm_est = 4 * TB * F * 4 + 8 * TB * 4 + 2 * F * 4
        vmem_limit = int(max(2 * hbm_est, 32 * 1024 * 1024))
        out = pl.pallas_call(
            mf_hbm_gather_kernel,
            out_shape=jax.ShapeDtypeStruct((num_tiles, 1, TB), jnp.float32),
            grid_spec=pltpu.PrefetchScalarGridSpec(
                num_scalar_prefetch=2,
                grid=(num_tiles,),
                in_specs=[
                    pl.BlockSpec(memory_space=pl.ANY),               # user table (HBM)
                    pl.BlockSpec(memory_space=pl.ANY),               # item table (HBM)
                    pl.BlockSpec((1, F), lambda t, u, i: (0, 0)),    # W
                    pl.BlockSpec(memory_space=pltpu.MemorySpace.SMEM),  # b
                ],
                out_specs=pl.BlockSpec((1, 1, TB), lambda t, u, i: (t, 0, 0)),
                scratch_shapes=[
                    pltpu.VMEM((TB, F), jnp.float32),
                    pltpu.VMEM((TB, F), jnp.float32),
                    pltpu.SemaphoreType.DMA((2,)),
                ],
            ),
            compiler_params=pltpu.CompilerParams(
                dimension_semantics=("parallel",),
                vmem_limit_bytes=vmem_limit,
            ),
        )(uid, iid, user_factors, item_factors, w2d, b2d)

    return out.reshape(B_pad, 1)[:B]  # (B, 1), padded rows dropped


if __name__ == "__main__":
    # Small shapes consistent with the module's __init__.
    n_users, n_items, n_factors = 64, 128, 32
    batch = 8

    key = jax.random.PRNGKey(0)
    k_u, k_i, k_w, k_b, k_uid, k_iid = jax.random.split(key, 6)

    # PyTorch-like init: Embedding ~ N(0,1); Linear(F,1) ~ U(-1/sqrt(F), 1/sqrt(F)).
    user_factors = jax.random.normal(k_u, (n_users, n_factors), dtype=jnp.float32)
    item_factors = jax.random.normal(k_i, (n_items, n_factors), dtype=jnp.float32)
    bound = 1.0 / (n_factors ** 0.5)
    w = jax.random.uniform(k_w, (1, n_factors), jnp.float32, -bound, bound)
    b = jax.random.uniform(k_b, (1, 1), jnp.float32, -bound, bound)

    user_ids = jax.random.randint(k_uid, (batch,), 0, n_users, dtype=jnp.int32)
    item_ids = jax.random.randint(k_iid, (batch,), 0, n_items, dtype=jnp.int32)

    # Pure-JAX reference.
    u = user_factors[user_ids]
    v = item_factors[item_ids]
    ref = jnp.maximum((u * v) @ w.T + b[0, 0], 0.0)

    # Fast path: VMEM-resident tables + one-hot MXU gather (auto-selected here).
    out_resident = jax.block_until_ready(
        mf_mse_forward(user_ids, item_ids, user_factors, item_factors, w, b))
    assert out_resident.shape == (batch, 1), out_resident.shape
    assert jnp.allclose(out_resident, ref, atol=1e-5, rtol=1e-5), (out_resident, ref)

    # Fallback path: HBM row-gather DMAs with a single bulk wait.
    out_hbm = jax.block_until_ready(
        mf_mse_forward(user_ids, item_ids, user_factors, item_factors, w, b,
                       force_hbm_gather=True))
    assert out_hbm.shape == (batch, 1), out_hbm.shape
    assert jnp.allclose(out_hbm, ref, atol=1e-5, rtol=1e-5), (out_hbm, ref)

    print("KERNEL_OK")
</pallas_src>

<mosaic_0001>
module attributes {stable_mosaic.version = 11 : i64} {
  func.func @mf_resident_kernel(%arg0: i32, %arg1: memref<8x1xi32, #tpu.memory_space<vmem>>, %arg2: memref<8x1xi32, #tpu.memory_space<vmem>>, %arg3: memref<64x32xf32, #tpu.memory_space<vmem>>, %arg4: memref<128x32xf32, #tpu.memory_space<vmem>>, %arg5: memref<1x32xf32, #tpu.memory_space<vmem>>, %arg6: memref<1x1xf32, #tpu.memory_space<smem>>, %arg7: memref<1x1x8xf32, #tpu.memory_space<vmem>>) attributes {dimension_semantics = [#tpu.dimension_semantics<parallel>], iteration_bounds = array<i64: 1>, scalar_prefetch = 0 : i64, scratch_operands = 0 : i64, tpu.core_type = #tpu.core_type<tc>, window_params = [{transform_indices = @transform_0, window_bounds = array<i64: 8, 1>}, {transform_indices = @transform_1, window_bounds = array<i64: 8, 1>}, {pipeline_mode = #tpu.pipeline_mode<synchronous>, transform_indices = @transform_2, window_bounds = array<i64: 64, 32>}, {pipeline_mode = #tpu.pipeline_mode<synchronous>, transform_indices = @transform_3, window_bounds = array<i64: 128, 32>}, {pipeline_mode = #tpu.pipeline_mode<synchronous>, transform_indices = @transform_4, window_bounds = array<i64: 1, 32>}, {transform_indices = @transform_5, window_bounds = array<i64: 1, 1>}, {transform_indices = @transform_6, window_bounds = array<i64: 1, 1, 8>}]} {
    %c0 = arith.constant 0 : index
    %c0_0 = arith.constant 0 : index
    %0 = vector.load %arg1[%c0, %c0_0] : memref<8x1xi32, #tpu.memory_space<vmem>>, vector<8x1xi32>
    %c0_1 = arith.constant 0 : index
    %c0_2 = arith.constant 0 : index
    %1 = vector.load %arg2[%c0_1, %c0_2] : memref<8x1xi32, #tpu.memory_space<vmem>>, vector<8x1xi32>
    %2 = tpu.iota {dimensions = array<i32: 1>} : vector<8x64xi32>
    %3 = vector.broadcast %0 : vector<8x1xi32> to vector<8x64xi32>
    %4 = arith.cmpi eq, %2, %3 : vector<8x64xi32>
    %5 = arith.extui %4 : vector<8x64xi1> to vector<8x64xi32>
    %6 = arith.sitofp %5 : vector<8x64xi32> to vector<8x64xf32>
    %7 = tpu.iota {dimensions = array<i32: 1>} : vector<8x128xi32>
    %8 = vector.broadcast %1 : vector<8x1xi32> to vector<8x128xi32>
    %9 = arith.cmpi eq, %7, %8 : vector<8x128xi32>
    %10 = arith.extui %9 : vector<8x128xi1> to vector<8x128xi32>
    %11 = arith.sitofp %10 : vector<8x128xi32> to vector<8x128xf32>
    %c0_3 = arith.constant 0 : index
    %c0_4 = arith.constant 0 : index
    %12 = vector.load %arg3[%c0_3, %c0_4] : memref<64x32xf32, #tpu.memory_space<vmem>>, vector<64x32xf32>
    %cst = arith.constant dense<0.000000e+00> : vector<8x32xf32>
    %13 = tpu.matmul %6, %12, %cst {dimension_numbers = #tpu.dot_dimension_numbers<[1], [0], [0], [1], [0, 0, 1, 1], [], []>} : vector<8x64xf32>, vector<64x32xf32>, vector<8x32xf32> -> vector<8x32xf32>
    %c0_5 = arith.constant 0 : index
    %c0_6 = arith.constant 0 : index
    %14 = vector.load %arg4[%c0_5, %c0_6] : memref<128x32xf32, #tpu.memory_space<vmem>>, vector<128x32xf32>
    %cst_7 = arith.constant dense<0.000000e+00> : vector<8x32xf32>
    %15 = tpu.matmul %11, %14, %cst_7 {dimension_numbers = #tpu.dot_dimension_numbers<[1], [0], [0], [1], [0, 0, 1, 1], [], []>} : vector<8x128xf32>, vector<128x32xf32>, vector<8x32xf32> -> vector<8x32xf32>
    %16 = arith.mulf %13, %15 : vector<8x32xf32>
    %c0_8 = arith.constant 0 : index
    %c0_9 = arith.constant 0 : index
    %17 = vector.load %arg5[%c0_8, %c0_9] : memref<1x32xf32, #tpu.memory_space<vmem>>, vector<1x32xf32>
    %c0_10 = arith.constant 0 : index
    %c0_11 = arith.constant 0 : index
    %18 = memref.load %arg6[%c0_10, %c0_11] : memref<1x1xf32, #tpu.memory_space<smem>>
    %cst_12 = arith.constant dense<0.000000e+00> : vector<1x8xf32>
    %19 = tpu.matmul %17, %16, %cst_12 {dimension_numbers = #tpu.dot_dimension_numbers<[1], [1], [0], [0], [0, 0, 1, 0], [], []>} : vector<1x32xf32>, vector<8x32xf32>, vector<1x8xf32> -> vector<1x8xf32>
    %20 = vector.broadcast %18 : f32 to vector<1x8xf32>
    %21 = arith.addf %19, %20 : vector<1x8xf32>
    %cst_13 = arith.constant 0.000000e+00 : f32
    %22 = vector.broadcast %cst_13 : f32 to vector<1x8xf32>
    %23 = arith.maximumf %21, %22 : vector<1x8xf32>
    %24 = vector.shape_cast %23 : vector<1x8xf32> to vector<1x1x8xf32>
    %c0_14 = arith.constant 0 : index
    %c0_15 = arith.constant 0 : index
    %c0_16 = arith.constant 0 : index
    %25 = vector.load %arg7[%c0_14, %c0_15, %c0_16] : memref<1x1x8xf32, #tpu.memory_space<vmem>>, vector<1x1x8xf32>
    tpu.vector_store %arg7[%c0_14, %c0_15, %c0_16], %24 {strides = array<i32>} : memref<1x1x8xf32, #tpu.memory_space<vmem>>, vector<1x1x8xf32>,
    return
  }
  func.func @transform_0(%arg0: i32) -> (i32, i32) {
    %c0_i32 = arith.constant 0 : i32
    %c0_i32_0 = arith.constant 0 : i32
    return %arg0, %c0_i32 : i32, i32
  }
  func.func @transform_1(%arg0: i32) -> (i32, i32) {
    %c0_i32 = arith.constant 0 : i32
    %c0_i32_0 = arith.constant 0 : i32
    return %arg0, %c0_i32 : i32, i32
  }
  func.func @transform_2(%arg0: i32) -> (i32, i32) {
    %c0_i32 = arith.constant 0 : i32
    %c0_i32_0 = arith.constant 0 : i32
    %c0_i32_1 = arith.constant 0 : i32
    return %c0_i32, %c0_i32_0 : i32, i32
  }
  func.func @transform_3(%arg0: i32) -> (i32, i32) {
    %c0_i32 = arith.constant 0 : i32
    %c0_i32_0 = arith.constant 0 : i32
    %c0_i32_1 = arith.constant 0 : i32
    return %c0_i32, %c0_i32_0 : i32, i32
  }
  func.func @transform_4(%arg0: i32) -> (i32, i32) {
    %c0_i32 = arith.constant 0 : i32
    %c0_i32_0 = arith.constant 0 : i32
    %c0_i32_1 = arith.constant 0 : i32
    return %c0_i32, %c0_i32_0 : i32, i32
  }
  func.func @transform_5(%arg0: i32) -> (i32, i32) {
    %c0_i32 = arith.constant 0 : i32
    %c0_i32_0 = arith.constant 0 : i32
    %c0_i32_1 = arith.constant 0 : i32
    return %c0_i32, %c0_i32_0 : i32, i32
  }
  func.func @transform_6(%arg0: i32) -> (i32, i32, i32) {
    %c0_i32 = arith.constant 0 : i32
    %c0_i32_0 = arith.constant 0 : i32
    %c0_i32_1 = arith.constant 0 : i32
    return %arg0, %c0_i32, %c0_i32_0 : i32, i32, i32
  }
}

</mosaic_0001>

<llo_original>
// kernel: mf_mse_forward.1
$region0: #{mf_mse_forward.1}
  #allocation0 [shape = 'u32[]', space=smem, size = 0x4, offset = 0x4, fixed_abs, tag = 'smem constant byte address 0x4 - core index']
  #allocation1 [shape = 'u32[144,128]{1,0:T(1,128)}', space=vmem, size = 0x12000, scoped, tag = 'internal scratch']
  #allocation2 [shape = 'f32[1,1]{1,0:T(1,128)S(6)}', space=smem, size = 0x200, scoped, tag = 'scoped memory for mf_mse_forward.1']
  %s0 = inlined_call_operand.vmem [shape: s32[8,1], index: 0, kind: input, shape index: {}]
  %s1 = inlined_call_operand.vmem [shape: s32[8,1], index: 1, kind: input, shape index: {}]
  %s2 = inlined_call_operand.vmem [shape: f32[64,32], index: 2, kind: input, shape index: {}]
  %s3 = inlined_call_operand.vmem [shape: f32[128,32], index: 3, kind: input, shape index: {}]
  %s4 = inlined_call_operand.vmem [shape: f32[1,32], index: 4, kind: input, shape index: {}]
  %s5 = inlined_call_operand.<no memory space> [shape: f32[1,1], index: 5, kind: input, shape index: {}]
  %s6 = inlined_call_operand.hbm [shape: f32[1,1,8], index: 6, kind: output, shape index: {}]
  %s7 = sld [smem:[#allocation0]]
  $region34: #{mf_mse_forward.1} parent=0
    _
  %s9 = ssub.s32 1, %s7
  %s10 = scalar_select 0, %s9, %s7
  %11 = sst [smem:[#allocation2]] %s5
  $region1: #{mf_mse_forward.1} parent=0
    #allocation3 [shape = 'u8[512]{0}', space=vmem, size = 0x400, scoped, tag = 'output window, operand 0, single buffered']
    #allocation4 [shape = 's32[1]{0}', space=sflag, size = 0x4, scoped, tag = 'scoped memory for mf_mse_forward.1']
    %12 = vsyncpa [#allocation4], 0
    // Predicated region
    $region2: #{mf_mse_forward.1} parent=1 // pred_check
      _
    $region3: #{mf_mse_forward.1} parent=1 // pred_check_branch
      %14 = sbr.rel (0) target = $region5
    $region4: #{mf_mse_forward.1} parent=1 // pred_region
      _
    $region5: #{mf_mse_forward.1} parent=1 // pred_fallthru
      _
    // Predicated region
    $region6: #{mf_mse_forward.1} parent=1 // pred_check
      _
    $region7: #{mf_mse_forward.1} parent=1 // pred_check_branch
      %16 = sbr.rel (0) target = $region9
    $region8: #{mf_mse_forward.1} parent=1 // pred_region
      _
    $region9: #{mf_mse_forward.1} parent=1 // pred_fallthru
      _
    // Predicated region
    $region10: #{mf_mse_forward.1} parent=1 // pred_check
      _
    $region11: #{mf_mse_forward.1} parent=1 // pred_check_branch
      %18 = sbr.rel (0) target = $region13
    $region12: #{mf_mse_forward.1} parent=1 // pred_region
      _
    $region13: #{mf_mse_forward.1} parent=1 // pred_fallthru
      _
    // Predicated region
    $region14: #{mf_mse_forward.1} parent=1 // pred_check
      _
    $region15: #{mf_mse_forward.1} parent=1 // pred_check_branch
      %20 = sbr.rel (0) target = $region17
    $region16: #{mf_mse_forward.1} parent=1 // pred_region
      _
    $region17: #{mf_mse_forward.1} parent=1 // pred_fallthru
      _
    // Predicated region
    $region18: #{mf_mse_forward.1} parent=1 // pred_check
      _
    $region19: #{mf_mse_forward.1} parent=1 // pred_check_branch
      %22 = sbr.rel (0) target = $region21
    $region20: #{mf_mse_forward.1} parent=1 // pred_region
      _
    $region21: #{mf_mse_forward.1} parent=1 // pred_fallthru
      _
    // Predicated region
    $region22: #{mf_mse_forward.1} parent=1 // pred_check
      _
    $region23: #{mf_mse_forward.1} parent=1 // pred_check_branch
      %24 = sbr.rel (0) target = $region25
    $region24: #{mf_mse_forward.1} parent=1 // pred_region
      _
    $region25: #{mf_mse_forward.1} parent=1 // pred_fallthru
      _
    %v25 = vld [vmem:[%s0] sm:$0xff]
    %v26 = vld [vmem:[%s1] sm:$0xff]
    %v27 = vlaneseq
    %v28 = vand.u32 %v27, 127
    %29 = vset.pattern.permute.xlu0 0
    %30 = vperm.xlu0 %29, %v25
    %v31 = vpop.permute.xlu0 %30
    %vm32 = vcmp.eq.s32.totalorder %v28, %v31
    %v33 = vsel %vm32, 1, 0
    %v34 = vcvt.s32.f32 %v33
    %35 = vset.pattern.permute.xlu0 0
    %36 = vperm.xlu0 %35, %v26
    %v37 = vpop.permute.xlu0 %36
    %vm38 = vcmp.eq.s32.totalorder %v28, %v37
    %v39 = vsel %vm38, 1, 0
    %v40 = vcvt.s32.f32 %v39
    %v41 = vld [vmem:[%s2] sm:$0xff]
    %v42 = vld [vmem:[%s2 + $0x8] sm:$0xff]
    %v43 = vld [vmem:[%s2 + $0x10] sm:$0xff]
    %v44 = vld [vmem:[%s2 + $0x18] sm:$0xff]
    %v45 = vld [vmem:[%s2 + $0x20] sm:$0xff]
    %v46 = vld [vmem:[%s2 + $0x28] sm:$0xff]
    %v47 = vld [vmem:[%s2 + $0x30] sm:$0xff]
    %v48 = vld [vmem:[%s2 + $0x38] sm:$0xff]
    %vm49 = vcmask 523264
    %v51 = vsel %vm49, %v34, 0
    %53 = vmatprep.subr.mxu0 0.0
    %54 = vmatpush1.msra.mxu0 %v41
    %55 = vmatprep.subr.mxu0 0.0
    %56 = vmatpush1.msra.mxu0 %v42
    %57 = vmatprep.subr.mxu0 0.0
    %58 = vmatpush1.msra.mxu0 %v43
    %59 = vmatprep.subr.mxu0 0.0
    %60 = vmatpush1.msra.mxu0 %v44
    %61 = vmatprep.subr.mxu0 0.0
    %62 = vmatpush1.msra.mxu0 %v45
    %63 = vmatprep.subr.mxu0 0.0
    %64 = vmatpush1.msra.mxu0 %v46
    %65 = vmatprep.subr.mxu0 0.0
    %66 = vmatpush1.msra.mxu0 %v47
    %67 = vmatprep.subr.mxu0 0.0
    %68 = vmatpush1.msra.mxu0 %v48
    %69 = vmatprep.subr.mxu0 0.0
    %70 = vmatpush1.msra.mxu0 0.0
    %71 = vmatprep.subr.mxu0 0.0
    %72 = vmatpush1.msra.mxu0 0.0
    %73 = vmatprep.subr.mxu0 0.0
    %74 = vmatpush1.msra.mxu0 0.0
    %75 = vmatprep.subr.mxu0 0.0
    %76 = vmatpush1.msra.mxu0 0.0
    %77 = vmatprep.subr.mxu0 0.0
    %78 = vmatpush1.msra.mxu0 0.0
    %79 = vmatprep.subr.mxu0 0.0
    %80 = vmatpush1.msra.mxu0 0.0
    %81 = vmatprep.subr.mxu0 0.0
    %82 = vmatpush1.msra.mxu0 0.0
    %83 = vmatprep.subr.mxu0 0.0
    %84 = vmatpush1.msra.mxu0 0.0
    %85 = vmatprep.subr.mxu0 0.0
    %86 = vmatpush1.msra.mxu0 0.0
    %87 = vmatprep.subr.mxu0 0.0
    %88 = vmatpush1.msra.mxu0 0.0
    %89 = vmatprep.subr.mxu0 0.0
    %90 = vmatpush1.msra.mxu0 0.0
    %91 = vmatprep.subr.mxu0 0.0
    %92 = vmatpush1.msra.mxu0 0.0
    %93 = vmatprep.subr.mxu0 0.0
    %94 = vmatpush1.msra.mxu0 0.0
    %95 = vmatprep.subr.mxu0 0.0
    %96 = vmatpush1.msra.mxu0 0.0
    %97 = vmatprep.subr.mxu0 0.0
    %98 = vmatpush1.msra.mxu0 0.0
    %99 = vmatprep.subr.mxu0 0.0
    %100 = vmatpush1.msra.mxu0 0.0
    %101 = vmatprep.subr.mxu0 0.0
    %102 = vmatpush1.msra.mxu0 0.0
    %103 = vmatprep.subr.mxu0 0.0
    %104 = vmatpush1.msra.mxu0 0.0
    %105 = vmatprep.subr.mxu0 0.0
    %106 = vmatpush1.msra.mxu0 0.0
    %107 = vmatprep.subr.mxu0 0.0
    %108 = vmatpush1.msra.mxu0 0.0
    %109 = vmatprep.subr.mxu0 0.0
    %110 = vmatpush1.msra.mxu0 0.0
    %111 = vmatprep.subr.mxu0 0.0
    %112 = vmatpush1.msra.mxu0 0.0
    %113 = vmatprep.subr.mxu0 0.0
    %114 = vmatpush1.msra.mxu0 0.0
    %115 = vmatprep.subr.mxu0 0.0
    %116 = vmatpush1.msra.mxu0 0.0
    %117 = vmatprep.mubr.f32.mxu0 0.0
    %118 = vmatmul.mubr.f32.gmra.mrb[0].mxu0 %v51
    %v119 = vpop.f32.mrb[0].mxu0
    %v120 = vadd.f32 0.0, %v119
    %v121 = vpop.f32.mrb[0].mxu0
    %122 = vdwg.mxu0
    %v123 = vld [vmem:[%s3] sm:$0xff]
    %v124 = vld [vmem:[%s3 + $0x8] sm:$0xff]
    %v125 = vld [vmem:[%s3 + $0x10] sm:$0xff]
    %v126 = vld [vmem:[%s3 + $0x18] sm:$0xff]
    %v127 = vld [vmem:[%s3 + $0x20] sm:$0xff]
    %v128 = vld [vmem:[%s3 + $0x28] sm:$0xff]
    %v129 = vld [vmem:[%s3 + $0x30] sm:$0xff]
    %v130 = vld [vmem:[%s3 + $0x38] sm:$0xff]
    %v131 = vld [vmem:[%s3 + $0x40] sm:$0xff]
    %v132 = vld [vmem:[%s3 + $0x48] sm:$0xff]
    %v133 = vld [vmem:[%s3 + $0x50] sm:$0xff]
    %v134 = vld [vmem:[%s3 + $0x58] sm:$0xff]
    %v135 = vld [vmem:[%s3 + $0x60] sm:$0xff]
    %v136 = vld [vmem:[%s3 + $0x68] sm:$0xff]
    %v137 = vld [vmem:[%s3 + $0x70] sm:$0xff]
    %v138 = vld [vmem:[%s3 + $0x78] sm:$0xff]
    %139 = vmatprep.subr.mxu0 0.0
    %140 = vmatpush1.msra.mxu0 %v123
    %141 = vmatprep.subr.mxu0 0.0
    %142 = vmatpush1.msra.mxu0 %v124
    %143 = vmatprep.subr.mxu0 0.0
    %144 = vmatpush1.msra.mxu0 %v125
    %145 = vmatprep.subr.mxu0 0.0
    %146 = vmatpush1.msra.mxu0 %v126
    %147 = vmatprep.subr.mxu0 0.0
    %148 = vmatpush1.msra.mxu0 %v127
    %149 = vmatprep.subr.mxu0 0.0
    %150 = vmatpush1.msra.mxu0 %v128
    %151 = vmatprep.subr.mxu0 0.0
    %152 = vmatpush1.msra.mxu0 %v129
    %153 = vmatprep.subr.mxu0 0.0
    %154 = vmatpush1.msra.mxu0 %v130
    %155 = vmatprep.subr.mxu0 0.0
    %156 = vmatpush1.msra.mxu0 %v131
    %157 = vmatprep.subr.mxu0 0.0
    %158 = vmatpush1.msra.mxu0 %v132
    %159 = vmatprep.subr.mxu0 0.0
    %160 = vmatpush1.msra.mxu0 %v133
    %161 = vmatprep.subr.mxu0 0.0
    %162 = vmatpush1.msra.mxu0 %v134
    %163 = vmatprep.subr.mxu0 0.0
    %164 = vmatpush1.msra.mxu0 %v135
    %165 = vmatprep.subr.mxu0 0.0
    %166 = vmatpush1.msra.mxu0 %v136
    %167 = vmatprep.subr.mxu0 0.0
    %168 = vmatpush1.msra.mxu0 %v137
    %169 = vmatprep.subr.mxu0 0.0
    %170 = vmatpush1.msra.mxu0 %v138
    %171 = vmatprep.subr.mxu0 0.0
    %172 = vmatpush1.msra.mxu0 0.0
    %173 = vmatprep.subr.mxu0 0.0
    %174 = vmatpush1.msra.mxu0 0.0
    %175 = vmatprep.subr.mxu0 0.0
    %176 = vmatpush1.msra.mxu0 0.0
    %177 = vmatprep.subr.mxu0 0.0
    %178 = vmatpush1.msra.mxu0 0.0
    %179 = vmatprep.subr.mxu0 0.0
    %180 = vmatpush1.msra.mxu0 0.0
    %181 = vmatprep.subr.mxu0 0.0
    %182 = vmatpush1.msra.mxu0 0.0
    %183 = vmatprep.subr.mxu0 0.0
    %184 = vmatpush1.msra.mxu0 0.0
    %185 = vmatprep.subr.mxu0 0.0
    %186 = vmatpush1.msra.mxu0 0.0
    %187 = vmatprep.subr.mxu0 0.0
    %188 = vmatpush1.msra.mxu0 0.0
    %189 = vmatprep.subr.mxu0 0.0
    %190 = vmatpush1.msra.mxu0 0.0
    %191 = vmatprep.subr.mxu0 0.0
    %192 = vmatpush1.msra.mxu0 0.0
    %193 = vmatprep.subr.mxu0 0.0
    %194 = vmatpush1.msra.mxu0 0.0
    %195 = vmatprep.subr.mxu0 0.0
    %196 = vmatpush1.msra.mxu0 0.0
    %197 = vmatprep.subr.mxu0 0.0
    %198 = vmatpush1.msra.mxu0 0.0
    %199 = vmatprep.subr.mxu0 0.0
    %200 = vmatpush1.msra.mxu0 0.0
    %201 = vmatprep.subr.mxu0 0.0
    %202 = vmatpush1.msra.mxu0 0.0
    %203 = vmatprep.mubr.f32.mxu0 0.0
    %204 = vmatmul.mubr.f32.gmra.mrb[0].mxu0 %v40
    %v205 = vpop.f32.mrb[0].mxu0
    %v206 = vadd.f32 0.0, %v205
    %v207 = vpop.f32.mrb[0].mxu0
    %208 = vdwg.mxu0
    %v209 = vmul.f32 %v120, %v206
    %v210 = vld [vmem:[%s4] sm:$0x1]
    %s211 = sld [smem:[#allocation2]]
    %v212 = vstv %s211
    %vm213 = vcmask 261120
    %v215 = vsel %vm213, %v210, 0
    %v218 = vsel %vm213, %v209, 0
    %220 = vmatprep.subr.mxu0 0.0
    %221 = vmatpush1.xpose.msra.mxu0 %v218
    %222 = vmatprep.subr.mxu0 0.0
    %223 = vmatpush1.xpose.msra.mxu0 0.0
    %224 = vmatprep.subr.mxu0 0.0
    %225 = vmatpush1.xpose.msra.mxu0 0.0
    %226 = vmatprep.subr.mxu0 0.0
    %227 = vmatpush1.xpose.msra.mxu0 0.0
    %228 = vmatprep.subr.mxu0 0.0
    %229 = vmatpush1.xpose.msra.mxu0 0.0
    %230 = vmatprep.subr.mxu0 0.0
    %231 = vmatpush1.xpose.msra.mxu0 0.0
    %232 = vmatprep.subr.mxu0 0.0
    %233 = vmatpush1.xpose.msra.mxu0 0.0
    %234 = vmatprep.subr.mxu0 0.0
    %235 = vmatpush1.xpose.msra.mxu0 0.0
    %236 = vmatprep.subr.mxu0 0.0
    %237 = vmatpush1.xpose.msra.mxu0 0.0
    %238 = vmatprep.subr.mxu0 0.0
    %239 = vmatpush1.xpose.msra.mxu0 0.0
    %240 = vmatprep.subr.mxu0 0.0
    %241 = vmatpush1.xpose.msra.mxu0 0.0
    %242 = vmatprep.subr.mxu0 0.0
    %243 = vmatpush1.xpose.msra.mxu0 0.0
    %244 = vmatprep.subr.mxu0 0.0
    %245 = vmatpush1.xpose.msra.mxu0 0.0
    %246 = vmatprep.subr.mxu0 0.0
    %247 = vmatpush1.xpose.msra.mxu0 0.0
    %248 = vmatprep.subr.mxu0 0.0
    %249 = vmatpush1.xpose.msra.mxu0 0.0
    %250 = vmatprep.subr.mxu0 0.0
    %251 = vmatpush1.xpose.msra.mxu0 0.0
    %252 = vmatprep.subr.mxu0 0.0
    %253 = vmatpush1.xpose.msra.mxu0 0.0
    %254 = vmatprep.subr.mxu0 0.0
    %255 = vmatpush1.xpose.msra.mxu0 0.0
    %256 = vmatprep.subr.mxu0 0.0
    %257 = vmatpush1.xpose.msra.mxu0 0.0
    %258 = vmatprep.subr.mxu0 0.0
    %259 = vmatpush1.xpose.msra.mxu0 0.0
    %260 = vmatprep.subr.mxu0 0.0
    %261 = vmatpush1.xpose.msra.mxu0 0.0
    %262 = vmatprep.subr.mxu0 0.0
    %263 = vmatpush1.xpose.msra.mxu0 0.0
    %264 = vmatprep.subr.mxu0 0.0
    %265 = vmatpush1.xpose.msra.mxu0 0.0
    %266 = vmatprep.subr.mxu0 0.0
    %267 = vmatpush1.xpose.msra.mxu0 0.0
    %268 = vmatprep.subr.mxu0 0.0
    %269 = vmatpush1.xpose.msra.mxu0 0.0
    %270 = vmatprep.subr.mxu0 0.0
    %271 = vmatpush1.xpose.msra.mxu0 0.0
    %272 = vmatprep.subr.mxu0 0.0
    %273 = vmatpush1.xpose.msra.mxu0 0.0
    %274 = vmatprep.subr.mxu0 0.0
    %275 = vmatpush1.xpose.msra.mxu0 0.0
    %276 = vmatprep.subr.mxu0 0.0
    %277 = vmatpush1.xpose.msra.mxu0 0.0
    %278 = vmatprep.subr.mxu0 0.0
    %279 = vmatpush1.xpose.msra.mxu0 0.0
    %280 = vmatprep.subr.mxu0 0.0
    %281 = vmatpush1.xpose.msra.mxu0 0.0
    %282 = vmatprep.subr.mxu0 0.0
    %283 = vmatpush1.xpose.msra.mxu0 0.0
    %284 = vmatprep.mubr.f32.mxu0 0.0
    %285 = vmatmul.mubr.f32.gmra.mrb[0].mxu0 %v215
    %v286 = vpop.f32.mrb[0].mxu0
    %v287 = vadd.f32 %v212, %v286
    %v288 = vpop.f32.mrb[0].mxu0
    %289 = vdwg.mxu0
    %v290 = vmax.f32 %v287, 0.0
    %vm291 = vcmask 57344
    %292 = vst.msk [vmem:[#allocation3] sm:$0x1] %vm291, %v290
    // Predicated region
    $region26: #{mf_mse_forward.1} parent=1 // pred_check
      _
    $region27: #{mf_mse_forward.1} parent=1 // pred_check_branch
      %294 = sbr.rel (0) target = $region29
    $region28: #{mf_mse_forward.1} parent=1 // pred_region
      %s296 = ssub.s32 16, 16
      %297 = vsyncadd [#allocation4], %s296
      %s299 = sshll.u32 [#allocation3], 4
      %s300 = int_to_ptr.vmem [resolvable:$true] %s299
      %302 = dma.vmem_to_hbm [thread:$0]  %s300, 16, %s6, [#allocation4]
    $region29: #{mf_mse_forward.1} parent=1 // pred_fallthru
      _
    // Predicated region
    $region30: #{mf_mse_forward.1} parent=1 // pred_check
      _
    $region31: #{mf_mse_forward.1} parent=1 // pred_check_branch
      %304 = sbr.rel (0) target = $region33
    $region32: #{mf_mse_forward.1} parent=1 // pred_region
      %305 = dma.done [#allocation4], 16
    $region33: #{mf_mse_forward.1} parent=1 // pred_fallthru
      _
    %306 = vsyncpa [#allocation4], 1

</llo_original>
